<compile_context>
chip_gen: v6e
topology: v6e:2x2x1
jax: 0.10.0
libtpu: 0.0.40
codegen_flags: <defaults>
</compile_context>

<pallas_src>
import functools

import jax
import jax.numpy as jnp
from jax.experimental import pallas as pl
from jax.experimental.pallas import tpu as pltpu


# ---------------------------------------------------------------------------
# Kernels
# ---------------------------------------------------------------------------

def _healpix_avgpool_vpu_kernel(x_ref, o_ref, *, kernel_size):
    """f32 path: k strided sublane slices accumulated on the VPU (exact)."""
    # x_ref: (TILE_POUT * k, C) VMEM tile ; o_ref: (TILE_POUT, C) VMEM tile
    tile_pout = o_ref.shape[0]
    acc = x_ref[pl.ds(0, tile_pout, stride=kernel_size), :].astype(jnp.float32)
    for i in range(1, kernel_size):
        acc = acc + x_ref[pl.ds(i, tile_pout, stride=kernel_size), :].astype(jnp.float32)
    o_ref[...] = (acc * jnp.float32(1.0 / kernel_size)).astype(o_ref.dtype)


def _healpix_avgpool_mxu_kernel(pool_ref, x_ref, o_ref, *, kernel_size):
    """Packed-dtype path: resident 0/1 pooling matrix on the (otherwise idle) MXU.

    pool_ref: (TILE_POUT, TILE_P) with pool[r, c] = 1 iff c // k == r (exact in any dtype).
    The MXU accumulates in f32; garbage rows of a padded tail block only feed output
    rows that are themselves discarded.
    """
    acc = jnp.dot(pool_ref[...], x_ref[...], preferred_element_type=jnp.float32)
    o_ref[...] = (acc * jnp.float32(1.0 / kernel_size)).astype(o_ref.dtype)


# ---------------------------------------------------------------------------
# Tiling / VMEM budgeting (padded footprints, generation-aware)
# ---------------------------------------------------------------------------

def _round_up(x, m):
    return ((x + m - 1) // m) * m


def _hw_vmem_budget():
    """Returns (working_set_budget_bytes, vmem_limit_bytes) for this TPU generation."""
    try:
        cap = int(pltpu.get_tpu_info().vmem_capacity_bytes)
    except Exception:  # pragma: no cover - be conservative if the query fails
        cap = 64 * 1024 * 1024
    if cap >= 128 * 1024 * 1024:          # v5e / v6e class
        return 40 * 1024 * 1024, 64 * 1024 * 1024
    # v7x class: only 64 MiB physical VMEM -> leave headroom under 48 MiB scoped limit.
    return 28 * 1024 * 1024, 48 * 1024 * 1024


def _choose_tile_pout(pout, kernel_size, channels, itemsize, batch, *,
                      use_mxu, budget_bytes):
    """Largest Pout tile whose *padded* double-buffered working set fits the budget."""
    c_pad = _round_up(channels, 128)                 # lane padding
    row_align = 8 * max(1, 4 // itemsize)            # sublane packing: 8 f32 / 16 bf16

    def working_set(tp_out):
        tp_in = tp_out * kernel_size
        in_b = _round_up(tp_in, row_align) * c_pad * itemsize
        out_b = _round_up(tp_out, row_align) * c_pad * itemsize
        pool_b = (_round_up(tp_out, row_align) * _round_up(tp_in, 128) * itemsize
                  if use_mxu else 0)
        # double-buffered input & output (+ pooling matrix, counted conservatively twice)
        return 2 * (in_b + out_b + pool_b)

    if pout <= row_align:
        return pout                                   # full-dim block is always legal

    if working_set(pout) <= budget_bytes:
        tile = pout                                   # single block along Pout
    else:
        # Binary search the largest sublane-aligned tile that fits the budget.
        lo, hi, best = 1, pout // row_align, 1
        while lo <= hi:
            mid = (lo + hi) // 2
            if working_set(mid * row_align) <= budget_bytes:
                best, lo = mid, mid + 1
            else:
                hi = mid - 1
        tile = best * row_align
        # Prefer a tile that divides Pout so the last block isn't a masked partial tile.
        t = tile
        while t >= max(row_align, tile // 2):
            if pout % t == 0:
                tile = t
                break
            t -= row_align

    # v7x megacore: both grid axes are "parallel"; avoid an odd total parallel extent of 1
    # leaving a TensorCore idle when the whole Pout axis fits in one block.
    steps = -(-pout // tile)
    if steps == 1 and (batch % 2 == 1) and pout % 2 == 0:
        half = pout // 2
        if half >= row_align and half % row_align == 0:
            tile = half
    return tile


# ---------------------------------------------------------------------------
# Wrapper
# ---------------------------------------------------------------------------

@functools.partial(jax.jit,
                   static_argnames=("kernel_size", "tile_pout", "vmem_limit", "use_mxu"))
def _healpix_avg_pool_impl(x, *, kernel_size, tile_pout, vmem_limit, use_mxu):
    B, P, C = x.shape
    pout = P // kernel_size
    tile_p = tile_pout * kernel_size
    itemsize = jnp.dtype(x.dtype).itemsize

    cost = pl.CostEstimate(
        flops=B * P * C + B * pout * C,
        transcendentals=0,
        bytes_accessed=B * P * C * itemsize + B * pout * C * itemsize,
    )
    cparams = pltpu.CompilerParams(
        dimension_semantics=("parallel", "parallel"),
        vmem_limit_bytes=vmem_limit,
    )
    out_shape = jax.ShapeDtypeStruct((B, pout, C), x.dtype)
    grid = (B, pl.cdiv(pout, tile_pout))
    x_spec = pl.BlockSpec((pl.Squeezed(), tile_p, C), lambda b, j: (b, j, 0))
    o_spec = pl.BlockSpec((pl.Squeezed(), tile_pout, C), lambda b, j: (b, j, 0))

    if use_mxu:
        # Resident 0/1 pooling selection matrix (exact in any float dtype).
        rows = jax.lax.broadcasted_iota(jnp.int32, (tile_pout, tile_p), 0)
        cols = jax.lax.broadcasted_iota(jnp.int32, (tile_pout, tile_p), 1)
        pool = (cols // kernel_size == rows).astype(x.dtype)
        kernel = functools.partial(_healpix_avgpool_mxu_kernel, kernel_size=kernel_size)
        return pl.pallas_call(
            kernel,
            out_shape=out_shape,
            grid=grid,
            in_specs=[pl.BlockSpec((tile_pout, tile_p), lambda b, j: (0, 0)), x_spec],
            out_specs=o_spec,
            compiler_params=cparams,
            cost_estimate=cost,
        )(pool, x)

    kernel = functools.partial(_healpix_avgpool_vpu_kernel, kernel_size=kernel_size)
    return pl.pallas_call(
        kernel,
        out_shape=out_shape,
        grid=grid,
        in_specs=[x_spec],
        out_specs=o_spec,
        compiler_params=cparams,
        cost_estimate=cost,
    )(x)


def healpix_avg_pool(x, kernel_size, tile_pout=None):
    """x: (batch, pixels, channels), nested ordering. Returns (batch, pixels//k, channels)."""
    B, P, C = x.shape
    if P % kernel_size != 0:
        raise ValueError("pixels must be divisible by kernel_size")
    pout = P // kernel_size
    itemsize = jnp.dtype(x.dtype).itemsize
    # Packed (sub-32-bit) dtypes avoid odd-offset strided sublane slices -> MXU path.
    use_mxu = itemsize < 4

    budget, vmem_limit = _hw_vmem_budget()
    if tile_pout is None:
        tile_pout = _choose_tile_pout(pout, kernel_size, C, itemsize, B,
                                      use_mxu=use_mxu, budget_bytes=budget)
    return _healpix_avg_pool_impl(x, kernel_size=int(kernel_size),
                                  tile_pout=int(tile_pout),
                                  vmem_limit=int(vmem_limit),
                                  use_mxu=bool(use_mxu))


def _ref(x, kernel_size):
    B, P, C = x.shape
    return x.reshape(B, P // kernel_size, kernel_size, C).mean(axis=2).astype(x.dtype)


if __name__ == "__main__":
    key = jax.random.PRNGKey(0)

    # Test 1: small shapes consistent with the module (nested-ordered healpix pixels).
    batch, pixels, channels, k = 2, 64, 8, 4       # kernel_size must be 4, 16, 64, ...
    x = jax.random.normal(key, (batch, pixels, channels), dtype=jnp.float32)
    out = jax.block_until_ready(healpix_avg_pool(x, k))
    ref = _ref(x, k)
    assert out.shape == (batch, pixels // k, channels), out.shape
    assert out.dtype == x.dtype
    assert jnp.allclose(out, ref, atol=1e-5, rtol=1e-5), "mismatch vs reference (test 1)"

    # Test 2: exercise the tiled Pout grid axis + strided window sum (f32 / VPU path).
    x2 = jax.random.normal(jax.random.PRNGKey(1), (2, 1024, 128), dtype=jnp.float32)
    out2 = jax.block_until_ready(healpix_avg_pool(x2, 4, tile_pout=64))
    ref2 = _ref(x2, 4)
    assert out2.shape == (2, 256, 128), out2.shape
    assert jnp.allclose(out2, ref2, atol=1e-5, rtol=1e-5), "mismatch vs reference (test 2)"

    # Test 3: packed dtype (bf16) -> MXU pooling-matmul path, k=16.
    x3 = jax.random.normal(jax.random.PRNGKey(2), (2, 256, 8),
                           dtype=jnp.float32).astype(jnp.bfloat16)
    out3 = jax.block_until_ready(healpix_avg_pool(x3, 16))
    ref3 = _ref(x3.astype(jnp.float32), 16).astype(jnp.bfloat16)
    assert out3.shape == (2, 16, 8), out3.shape
    assert out3.dtype == jnp.bfloat16
    assert jnp.allclose(out3.astype(jnp.float32), ref3.astype(jnp.float32),
                        atol=2e-2, rtol=2e-2), "mismatch vs reference (test 3)"

    print("KERNEL_OK")
</pallas_src>

<mosaic_0001>
module attributes {stable_mosaic.version = 11 : i64} {
  func.func @_healpix_avgpool_vpu_kernel(%arg0: i32, %arg1: i32, %arg2: memref<1x64x8xf32, #tpu.memory_space<vmem>>, %arg3: memref<1x16x8xf32, #tpu.memory_space<vmem>>) attributes {dimension_semantics = [#tpu.dimension_semantics<parallel>, #tpu.dimension_semantics<parallel>], iteration_bounds = array<i64: 2, 1>, scalar_prefetch = 0 : i64, scratch_operands = 0 : i64, tpu.core_type = #tpu.core_type<tc>, window_params = [{transform_indices = @transform_0, window_bounds = array<i64: 1, 64, 8>}, {transform_indices = @transform_1, window_bounds = array<i64: 1, 16, 8>}]} {
    %c0 = arith.constant 0 : index
    %c0_0 = arith.constant 0 : index
    %c0_1 = arith.constant 0 : index
    %0 = tpu.strided_load %arg2[%c0, %c0_0, %c0_1] {strides = array<i32: 1, 4, 1>} : memref<1x64x8xf32, #tpu.memory_space<vmem>>, vector<1x16x8xf32>
    %1 = vector.shape_cast %0 : vector<1x16x8xf32> to vector<16x8xf32>
    %c0_2 = arith.constant 0 : index
    %c1 = arith.constant 1 : index
    %c0_3 = arith.constant 0 : index
    %2 = tpu.strided_load %arg2[%c0_2, %c1, %c0_3] {strides = array<i32: 1, 4, 1>} : memref<1x64x8xf32, #tpu.memory_space<vmem>>, vector<1x16x8xf32>
    %3 = vector.shape_cast %2 : vector<1x16x8xf32> to vector<16x8xf32>
    %4 = arith.addf %1, %3 : vector<16x8xf32>
    %c0_4 = arith.constant 0 : index
    %c2 = arith.constant 2 : index
    %c0_5 = arith.constant 0 : index
    %5 = tpu.strided_load %arg2[%c0_4, %c2, %c0_5] {strides = array<i32: 1, 4, 1>} : memref<1x64x8xf32, #tpu.memory_space<vmem>>, vector<1x16x8xf32>
    %6 = vector.shape_cast %5 : vector<1x16x8xf32> to vector<16x8xf32>
    %7 = arith.addf %4, %6 : vector<16x8xf32>
    %c0_6 = arith.constant 0 : index
    %c3 = arith.constant 3 : index
    %c0_7 = arith.constant 0 : index
    %8 = tpu.strided_load %arg2[%c0_6, %c3, %c0_7] {strides = array<i32: 1, 4, 1>} : memref<1x64x8xf32, #tpu.memory_space<vmem>>, vector<1x16x8xf32>
    %9 = vector.shape_cast %8 : vector<1x16x8xf32> to vector<16x8xf32>
    %10 = arith.addf %7, %9 : vector<16x8xf32>
    %cst = arith.constant 2.500000e-01 : f32
    %11 = vector.broadcast %cst : f32 to vector<16x8xf32>
    %12 = arith.mulf %10, %11 : vector<16x8xf32>
    %c0_8 = arith.constant 0 : index
    %c0_9 = arith.constant 0 : index
    %c0_10 = arith.constant 0 : index
    %13 = vector.load %arg3[%c0_8, %c0_9, %c0_10] : memref<1x16x8xf32, #tpu.memory_space<vmem>>, vector<1x16x8xf32>
    %14 = vector.shape_cast %13 : vector<1x16x8xf32> to vector<16x8xf32>
    %15 = vector.shape_cast %12 : vector<16x8xf32> to vector<1x16x8xf32>
    tpu.vector_store %arg3[%c0_8, %c0_9, %c0_10], %15 {strides = array<i32>} : memref<1x16x8xf32, #tpu.memory_space<vmem>>, vector<1x16x8xf32>,
    return
  }
  func.func @transform_0(%arg0: i32, %arg1: i32) -> (i32, i32, i32) {
    %c0_i32 = arith.constant 0 : i32
    %c0_i32_0 = arith.constant 0 : i32
    return %arg0, %arg1, %c0_i32 : i32, i32, i32
  }
  func.func @transform_1(%arg0: i32, %arg1: i32) -> (i32, i32, i32) {
    %c0_i32 = arith.constant 0 : i32
    %c0_i32_0 = arith.constant 0 : i32
    return %arg0, %arg1, %c0_i32 : i32, i32, i32
  }
}

</mosaic_0001>

<llo_original>
// kernel: _healpix_avg_pool_impl.1
$region0: #{_healpix_avg_pool_impl.1}
  #allocation0 [shape = 'u32[]', space=smem, size = 0x4, offset = 0x4, fixed_abs, tag = 'smem constant byte address 0x4 - core index']
  #allocation1 [shape = 'u32[144,128]{1,0:T(1,128)}', space=vmem, size = 0x12000, scoped, tag = 'internal scratch']
  %s0 = inlined_call_operand.vmem [shape: f32[2,64,8], index: 0, kind: input, shape index: {}]
  %s1 = inlined_call_operand.vmem [shape: f32[2,16,8], index: 1, kind: output, shape index: {}]
  %s2 = sld [smem:[#allocation0]]
  $region37: #{_healpix_avg_pool_impl.1} parent=0
    _
  %s4 = ssub.s32 1, %s2
  %s5 = scalar_select 0, %s4, %s2
  loop: start=0, step=1, limit=4
  $region2: #{_healpix_avg_pool_impl.1} parent=0 // loop_pre_header
    _
  $region3: #{_healpix_avg_pool_impl.1} parent=0 // loop_header
    %s7 = sphi 0, %s11
    %p8 = scmp.ge.s32.totalorder %s7, 4
    %s14 = sphi 0, %s26
    %s15 = sphi 0, %s22
    %s16 = sphi 0, %s14
    %s17 = sphi 0, %s15
    %s18 = sphi 0, %s16
    %s19 = sphi 0, %s17
    %s31 = sphi 0, %s33
    %s34 = sphi 0, %s31
    %s35 = sphi 0, %s34
    %s51 = sphi 0, %s35
    %s59 = sphi 0, %s61
    %s62 = sphi 0, %s59
    %s63 = sphi 0, %s62
    %s79 = sphi 0, %s63
  $region4: #{_healpix_avg_pool_impl.1} parent=0 // loop_header_branch
    %10 = sbr.rel (%p8) target = $region8
  $region5: #{_healpix_avg_pool_impl.1} parent=0 // loop_body
    %s12 = ssub.s32 %s7, 1
    %s13 = ssub.s32 %s7, 2
    %s20 = sadd.s32 1, %s15
    %p21 = scmp.ge.s32.totalorder %s20, 1
    %s22 = scalar_select %p21, 0, %s20
    %s23 = sadd.s32 1, %s14
    %s24 = scalar_select %p21, %s23, %s14
    %p25 = scmp.ge.s32.totalorder %s24, 2
    %s26 = scalar_select %p25, 0, %s24
    %s27 = ssub.s32 %s14, %s26
    %s28 = ssub.s32 %s15, %s22
    %s29 = sor.u32 %s27, %s28
    %p30 = scmp.eq.s32.totalorder %s29, 0
    %s32 = sadd.s32 %s31, 1
    %s33 = scalar_select %p30, %s31, %s32
    %p36 = pneg %p30
    %p37 = scmp.eq.s32.totalorder %s7, 1
    %p38 = por %p36, %p37
    %p39 = scmp.ne.s32.totalorder %s31, %s34
    %p40 = scmp.eq.s32.totalorder %s7, 0
    %p41 = por %p39, %p40
    %p42 = scmp.ne.s32.totalorder %s31, %s34
    %p43 = scmp.eq.s32.totalorder %s12, 1
    %p44 = por %p42, %p43
    %p45 = scmp.ne.s32.totalorder %s34, %s35
    %p46 = scmp.eq.s32.totalorder %s12, 0
    %p47 = por %p45, %p46
    %p48 = scmp.ne.s32.totalorder %s34, %s35
    %p49 = scmp.eq.s32.totalorder %s13, 1
    %p50 = por %p48, %p49
    %p52 = scmp.ne.s32.totalorder %s35, %s51
    %p53 = scmp.eq.s32.totalorder %s13, 0
    %p54 = por %p52, %p53
    %s55 = ssub.s32 %s14, %s26
    %s56 = ssub.s32 %s15, %s22
    %s57 = sor.u32 %s55, %s56
    %p58 = scmp.eq.s32.totalorder %s57, 0
    %s60 = sadd.s32 %s59, 1
    %s61 = scalar_select %p58, %s59, %s60
    %p64 = pneg %p58
    %p65 = scmp.eq.s32.totalorder %s7, 1
    %p66 = por %p64, %p65
    %p67 = scmp.ne.s32.totalorder %s59, %s62
    %p68 = scmp.eq.s32.totalorder %s7, 0
    %p69 = por %p67, %p68
    %p70 = scmp.ne.s32.totalorder %s59, %s62
    %p71 = scmp.eq.s32.totalorder %s12, 1
    %p72 = por %p70, %p71
    %p73 = scmp.ne.s32.totalorder %s62, %s63
    %p74 = scmp.eq.s32.totalorder %s12, 0
    %p75 = por %p73, %p74
    %p76 = scmp.ne.s32.totalorder %s62, %s63
    %p77 = scmp.eq.s32.totalorder %s13, 1
    %p78 = por %p76, %p77
    %p80 = scmp.ne.s32.totalorder %s63, %s79
    %p81 = scmp.eq.s32.totalorder %s13, 0
    %p82 = por %p80, %p81
    %p83 = scmp.le.s32.totalorder 1, %s7
    %p84 = scmp.lt.s32.totalorder %s7, 3
    %p85 = pnand %p83, %p84
    %p86 = pneg %p85
    // Predicated region
    $region9: #{_healpix_avg_pool_impl.1} parent=5 // pred_check
      _
    $region10: #{_healpix_avg_pool_impl.1} parent=5 // pred_check_branch
      %88 = sbr.rel (%p85) target = $region12
    $region11: #{_healpix_avg_pool_impl.1} parent=5 // pred_region
      %s89 = ssub.s32 %s7, 1
    $region12: #{_healpix_avg_pool_impl.1} parent=5 // pred_fallthru
      _
    %p90 = scmp.lt.s32.totalorder %s7, 2
    // Predicated region
    $region13: #{_healpix_avg_pool_impl.1} parent=5 // pred_check
      %p91 = pneg %p90
    $region14: #{_healpix_avg_pool_impl.1} parent=5 // pred_check_branch
      %93 = sbr.rel (%p91) target = $region16
    $region15: #{_healpix_avg_pool_impl.1} parent=5 // pred_region
      // Predicated region
      $region17: #{_healpix_avg_pool_impl.1} parent=15 // pred_check
        %p94 = pneg %p41
      $region18: #{_healpix_avg_pool_impl.1} parent=15 // pred_check_branch
        %96 = sbr.rel (%p94) target = $region20
      $region19: #{_healpix_avg_pool_impl.1} parent=15 // pred_region
        %s97 = smul.u32 8, %s15
        %p98 = scmp.lt.s32.totalorder %s14, 1
        %s99 = scalar_select %p98, %s14, 1
        %p100 = scmp.lt.s32.totalorder %s97, 7
        %s101 = scalar_select %p100, %s97, 7
        %s102 = smul.addr %s99, 8
        %s103 = sadd.s32 %s101, %s102
        %s104 = smul.addr %s103, 8
        %s105 = scalar_lea.vmem %s0, %s104
        %s106 = smul.u32 8, %s15
      $region20: #{_healpix_avg_pool_impl.1} parent=15 // pred_fallthru
        _
    $region16: #{_healpix_avg_pool_impl.1} parent=5 // pred_fallthru
      _
    %p107 = scmp.le.s32.totalorder 1, %s7
    %p108 = scmp.lt.s32.totalorder %s7, 3
    %p109 = pnand %p107, %p108
    %p110 = pneg %p109
    // Predicated region
    $region21: #{_healpix_avg_pool_impl.1} parent=5 // pred_check
      _
    $region22: #{_healpix_avg_pool_impl.1} parent=5 // pred_check_branch
      %112 = sbr.rel (%p109) target = $region24
    $region23: #{_healpix_avg_pool_impl.1} parent=5 // pred_region
      %s113 = ssub.s32 %s7, 1
      %s114 = smul.u32 8, %s17
      %p115 = scmp.lt.s32.totalorder %s16, 1
      %s116 = scalar_select %p115, %s16, 1
      %p117 = scmp.lt.s32.totalorder %s114, 7
      %s118 = scalar_select %p117, %s114, 7
      %s119 = smul.addr %s116, 8
      %s120 = sadd.s32 %s118, %s119
      %s121 = smul.addr %s120, 8
      %s122 = scalar_lea.vmem %s0, %s121
      %p123 = pneg %p47
      %p124 = pneg %p44
      %p125 = pneg %p75
      %p126 = pneg %p72
      %s127 = smul.u32 2, %s17
      %p128 = scmp.lt.s32.totalorder %s16, 1
      %s129 = scalar_select %p128, %s16, 1
      %p130 = scmp.lt.s32.totalorder %s127, 1
      %s131 = scalar_select %p130, %s127, 1
      %s132 = smul.addr %s129, 2
      %s133 = sadd.s32 %s131, %s132
      %s134 = smul.addr %s133, 8
      %s135 = scalar_lea.vmem %s1, %s134
      %s136 = smul.u32 8, %s17
      %p137 = scmp.lt.s32.totalorder %s16, 1
      %s138 = scalar_select %p137, %s16, 1
      %p139 = scmp.lt.s32.totalorder %s136, 7
      %s140 = scalar_select %p139, %s136, 7
      %s141 = smul.addr %s138, 8
      %s142 = sadd.s32 %s140, %s141
      %s143 = smul.addr %s142, 8
      %s144 = scalar_lea.vmem %s0, %s143
      %s145 = smul.u32 8, %s17
      %s146 = smul.u32 2, %s17
      %p147 = scmp.lt.s32.totalorder %s16, 1
      %s148 = scalar_select %p147, %s16, 1
      %p149 = scmp.lt.s32.totalorder %s146, 1
      %s150 = scalar_select %p149, %s146, 1
      %s151 = smul.addr %s148, 2
      %s152 = sadd.s32 %s150, %s151
      %s153 = smul.addr %s152, 8
      %s154 = scalar_lea.vmem %s1, %s153
      %s155 = smul.u32 2, %s17
      %v156 = vld [vmem:[%s144] ss:$4 sm:$0xff]
      %s157 = scalar_lea.vmem %s144, 32
      %v158 = vld [vmem:[%s157] ss:$4 sm:$0xff]
      %s159 = scalar_lea.vmem %s144, 1
      %v160 = vld [vmem:[%s159] ss:$4 sm:$0xff]
      %s161 = scalar_lea.vmem %s144, 33
      %v162 = vld [vmem:[%s161] ss:$4 sm:$0xff]
      %v163 = vadd.f32 %v156, %v160
      %v164 = vadd.f32 %v158, %v162
      %s165 = scalar_lea.vmem %s144, 2
      %v166 = vld [vmem:[%s165] ss:$4 sm:$0xff]
      %s167 = scalar_lea.vmem %s144, 34
      %v168 = vld [vmem:[%s167] ss:$4 sm:$0xff]
      %v169 = vadd.f32 %v163, %v166
      %v170 = vadd.f32 %v164, %v168
      %s171 = scalar_lea.vmem %s144, 3
      %v172 = vld [vmem:[%s171] ss:$4 sm:$0xff]
      %s173 = scalar_lea.vmem %s144, 35
      %v174 = vld [vmem:[%s173] ss:$4 sm:$0xff]
      %v175 = vadd.f32 %v169, %v172
      %v176 = vadd.f32 %v170, %v174
      %v177 = vmul.f32 %v175, 0.25
      %v178 = vmul.f32 %v176, 0.25
      %vm179 = vcmask 64512
      %180 = vst.msk [vmem:[%s154] sm:$0xff] %vm179, %v177
      %181 = vst.msk [vmem:[%s154 + $0x8] sm:$0xff] %vm179, %v178
      %s182 = smul.u32 2, %s17
      %p183 = scmp.lt.s32.totalorder %s16, 1
      %s184 = scalar_select %p183, %s16, 1
      %p185 = scmp.lt.s32.totalorder %s182, 1
      %s186 = scalar_select %p185, %s182, 1
      %s187 = smul.addr %s184, 2
      %s188 = sadd.s32 %s186, %s187
      %s189 = smul.addr %s188, 8
      %s190 = scalar_lea.vmem %s1, %s189
      // Predicated region
      $region25: #{_healpix_avg_pool_impl.1} parent=23 // pred_check
        %p191 = pneg %p72
      $region26: #{_healpix_avg_pool_impl.1} parent=23 // pred_check_branch
        %193 = sbr.rel (%p191) target = $region28
      $region27: #{_healpix_avg_pool_impl.1} parent=23 // pred_region
        %s194 = smul.u32 2, %s17
      $region28: #{_healpix_avg_pool_impl.1} parent=23 // pred_fallthru
        _
    $region24: #{_healpix_avg_pool_impl.1} parent=5 // pred_fallthru
      _
    %p195 = scmp.le.s32.totalorder 2, %s7
    // Predicated region
    $region29: #{_healpix_avg_pool_impl.1} parent=5 // pred_check
      %p196 = pneg %p195
    $region30: #{_healpix_avg_pool_impl.1} parent=5 // pred_check_branch
      %198 = sbr.rel (%p196) target = $region32
    $region31: #{_healpix_avg_pool_impl.1} parent=5 // pred_region
      %s199 = ssub.s32 %s7, 2
      // Predicated region
      $region33: #{_healpix_avg_pool_impl.1} parent=31 // pred_check
        %p200 = pneg %p78
      $region34: #{_healpix_avg_pool_impl.1} parent=31 // pred_check_branch
        %202 = sbr.rel (%p200) target = $region36
      $region35: #{_healpix_avg_pool_impl.1} parent=31 // pred_region
        %s203 = smul.u32 2, %s19
        %p204 = scmp.lt.s32.totalorder %s18, 1
        %s205 = scalar_select %p204, %s18, 1
        %p206 = scmp.lt.s32.totalorder %s203, 1
        %s207 = scalar_select %p206, %s203, 1
        %s208 = smul.addr %s205, 2
        %s209 = sadd.s32 %s207, %s208
        %s210 = smul.addr %s209, 8
        %s211 = scalar_lea.vmem %s1, %s210
      $region36: #{_healpix_avg_pool_impl.1} parent=31 // pred_fallthru
        _
    $region32: #{_healpix_avg_pool_impl.1} parent=5 // pred_fallthru
      _
  $region6: #{_healpix_avg_pool_impl.1} parent=0 // loop_footer
    %s11 = sadd.s32 1, %s7
  $region7: #{_healpix_avg_pool_impl.1} parent=0 // loop_footer_branch
    %6 = sbr.rel target = $region3
  $region8: #{_healpix_avg_pool_impl.1} parent=0 // loop_exit
    _

</llo_original>
